<compile_context>
chip_gen: v5e
topology: v5e:2x2
jax: 0.10.0
libtpu: 0.0.40
codegen_flags: <defaults>
</compile_context>

<pallas_src>
import jax
import jax.numpy as jnp
from jax.experimental import pallas as pl
from jax.experimental.pallas import tpu as pltpu

_EPS = 1e-9
_LANES = 128
_SUBLANES = 8
# Sentinel pad logits whose loss contribution is exactly 0.0 in float32.
_PAD_T = 40.0    # sigmoid(40)  -> 1.0 ; log(1.0 + 1e-9) == 0.0 (f32)
_PAD_Y = -40.0   # sigmoid(-40) -> 0.0 ; log(1.0 - 0.0 + 1e-9) == 0.0 (f32)


def _disc_loss_kernel(py_ref, pt_ref, partial_ref):
    """Reduce one (block_rows, 128) tile pair to an (8, 128) partial sum."""
    pt = pt_ref[...].astype(jnp.float32)
    py = py_ref[...].astype(jnp.float32)

    # log(sigmoid(P_T) + eps) + log(1 - sigmoid(P_Y) + eps), single expression.
    term = (jnp.log(jax.nn.sigmoid(pt) + _EPS)
            + jnp.log(1.0 - jax.nn.sigmoid(py) + _EPS))

    # Tile-preserving reshape (groups of 8 sublane rows) + VPU accumulation
    # down to one (8, 128) vreg; stored unmasked to the per-block output row.
    br = term.shape[0]
    partial_ref[...] = jnp.sum(term.reshape(br // _SUBLANES, _SUBLANES, _LANES),
                               axis=0)


def disc_loss(p_y, p_t, *, max_block_rows=2048):
    assert p_y.shape == p_t.shape, "P_Y and P_T must have matching shapes"
    n = int(p_y.size)

    # Row geometry: lane-dense (rows, 128) slab, rows padded to a multiple of 8
    # (sublane alignment) and of the chosen block size.
    n_rows = pl.cdiv(n, _LANES)
    rows_aligned = pl.cdiv(n_rows, _SUBLANES) * _SUBLANES
    block_rows = min(rows_aligned, max_block_rows)   # max_block_rows % 16 == 0
    rows_pad = pl.cdiv(rows_aligned, block_rows) * block_rows
    padded = rows_pad * _LANES
    num_blocks = rows_pad // block_rows

    def to_slab(x, pad_value):
        x = jnp.ravel(x)                      # keep original dtype
        if padded != n:                       # no-op for the (2,4,16,16) case
            x = jnp.pad(x, (0, padded - n), constant_values=pad_value)
        return x.reshape(rows_pad, _LANES)

    py2d = to_slab(p_y, _PAD_Y)
    pt2d = to_slab(p_t, _PAD_T)

    partials = pl.pallas_call(
        _disc_loss_kernel,
        out_shape=jax.ShapeDtypeStruct((num_blocks * _SUBLANES, _LANES),
                                       jnp.float32),
        grid_spec=pltpu.PrefetchScalarGridSpec(
            num_scalar_prefetch=0,
            grid=(num_blocks,),
            in_specs=[
                pl.BlockSpec((block_rows, _LANES), lambda i: (i, 0)),
                pl.BlockSpec((block_rows, _LANES), lambda i: (i, 0)),
            ],
            out_specs=pl.BlockSpec((_SUBLANES, _LANES), lambda i: (i, 0)),
        ),
        compiler_params=pltpu.CompilerParams(
            # Independent per-block partials -> parallel axis (dual-TC on v7x).
            dimension_semantics=("parallel",),
        ),
    )(py2d, pt2d)

    # -(sum_t + sum_y) / N  ==  -mean(log_t) - mean(log_y)
    return -jnp.sum(partials) / jnp.float32(n)


def _disc_loss_ref(p_y, p_t):
    p_y = p_y.astype(jnp.float32)
    p_t = p_t.astype(jnp.float32)
    return (-jnp.mean(jnp.log(jax.nn.sigmoid(p_t) + _EPS))
            - jnp.mean(jnp.log(1.0 - jax.nn.sigmoid(p_y) + _EPS)))


if __name__ == "__main__":
    key = jax.random.PRNGKey(0)
    k1, k2 = jax.random.split(key)
    # Discriminator logits, NCHW layout.
    p_y = jax.random.normal(k1, (2, 4, 16, 16), dtype=jnp.float32)
    p_t = jax.random.normal(k2, (2, 4, 16, 16), dtype=jnp.float32)

    loss = jax.block_until_ready(disc_loss(p_y, p_t))
    ref = jax.block_until_ready(_disc_loss_ref(p_y, p_t))

    assert jnp.allclose(loss, ref, rtol=1e-5, atol=1e-5), (loss, ref)
    print("KERNEL_OK")
</pallas_src>

<mosaic_0001>
module attributes {stable_mosaic.version = 11 : i64} {
  func.func @_disc_loss_kernel(%arg0: i32, %arg1: memref<16x128xf32, #tpu.memory_space<vmem>>, %arg2: memref<16x128xf32, #tpu.memory_space<vmem>>, %arg3: memref<8x128xf32, #tpu.memory_space<vmem>>) attributes {dimension_semantics = [#tpu.dimension_semantics<parallel>], iteration_bounds = array<i64: 1>, scalar_prefetch = 0 : i64, scratch_operands = 0 : i64, tpu.core_type = #tpu.core_type<tc>, window_params = [{transform_indices = @transform_0, window_bounds = array<i64: 16, 128>}, {transform_indices = @transform_1, window_bounds = array<i64: 16, 128>}, {transform_indices = @transform_2, window_bounds = array<i64: 8, 128>}]} {
    %c0 = arith.constant 0 : index
    %c0_0 = arith.constant 0 : index
    %0 = vector.load %arg2[%c0, %c0_0] : memref<16x128xf32, #tpu.memory_space<vmem>>, vector<16x128xf32>
    %c0_1 = arith.constant 0 : index
    %c0_2 = arith.constant 0 : index
    %1 = vector.load %arg1[%c0_1, %c0_2] : memref<16x128xf32, #tpu.memory_space<vmem>>, vector<16x128xf32>
    %2 = arith.negf %0 : vector<16x128xf32>
    %3 = math.exp %2 : vector<16x128xf32>
    %cst = arith.constant 1.000000e+00 : f32
    %4 = vector.broadcast %cst : f32 to vector<16x128xf32>
    %5 = arith.addf %4, %3 : vector<16x128xf32>
    %6 = arith.divf %4, %5 : vector<16x128xf32>
    %cst_3 = arith.constant 9.99999971E-10 : f32
    %7 = vector.broadcast %cst_3 : f32 to vector<16x128xf32>
    %8 = arith.addf %6, %7 : vector<16x128xf32>
    %9 = math.log %8 : vector<16x128xf32>
    %10 = arith.negf %1 : vector<16x128xf32>
    %11 = math.exp %10 : vector<16x128xf32>
    %cst_4 = arith.constant 1.000000e+00 : f32
    %12 = vector.broadcast %cst_4 : f32 to vector<16x128xf32>
    %13 = arith.addf %12, %11 : vector<16x128xf32>
    %14 = arith.divf %12, %13 : vector<16x128xf32>
    %cst_5 = arith.constant 1.000000e+00 : f32
    %15 = vector.broadcast %cst_5 : f32 to vector<16x128xf32>
    %16 = arith.subf %15, %14 : vector<16x128xf32>
    %cst_6 = arith.constant 9.99999971E-10 : f32
    %17 = vector.broadcast %cst_6 : f32 to vector<16x128xf32>
    %18 = arith.addf %16, %17 : vector<16x128xf32>
    %19 = math.log %18 : vector<16x128xf32>
    %20 = arith.addf %9, %19 : vector<16x128xf32>
    %21 = vector.shape_cast %20 : vector<16x128xf32> to vector<2x8x128xf32>
    %cst_7 = arith.constant dense<0.000000e+00> : vector<8x128xf32>
    %22 = vector.multi_reduction <add>, %21, %cst_7 [0] : vector<2x8x128xf32> to vector<8x128xf32>
    %c0_8 = arith.constant 0 : index
    %c0_9 = arith.constant 0 : index
    %23 = vector.load %arg3[%c0_8, %c0_9] : memref<8x128xf32, #tpu.memory_space<vmem>>, vector<8x128xf32>
    tpu.vector_store %arg3[%c0_8, %c0_9], %22 {strides = array<i32>} : memref<8x128xf32, #tpu.memory_space<vmem>>, vector<8x128xf32>,
    return
  }
  func.func @transform_0(%arg0: i32) -> (i32, i32) {
    %c0_i32 = arith.constant 0 : i32
    %c0_i32_0 = arith.constant 0 : i32
    return %arg0, %c0_i32 : i32, i32
  }
  func.func @transform_1(%arg0: i32) -> (i32, i32) {
    %c0_i32 = arith.constant 0 : i32
    %c0_i32_0 = arith.constant 0 : i32
    return %arg0, %c0_i32 : i32, i32
  }
  func.func @transform_2(%arg0: i32) -> (i32, i32) {
    %c0_i32 = arith.constant 0 : i32
    %c0_i32_0 = arith.constant 0 : i32
    return %arg0, %c0_i32 : i32, i32
  }
}

</mosaic_0001>

<llo_original>
// kernel: tpu_custom_call.1
$region0: #{tpu_custom_call.1}
  #allocation0 [shape = 'u32[]', space=smem, size = 0x4, offset = 0x4, fixed_abs, tag = 'smem constant byte address 0x4 - core index']
  #allocation1 [shape = 'u32[72,128]{1,0:T(1,128)}', space=vmem, size = 0x9000, scoped, tag = 'internal scratch']
  %s0 = inlined_call_operand.hbm [shape: f32[16,128], index: 0, kind: input, shape index: {}]
  %s1 = inlined_call_operand.hbm [shape: f32[16,128], index: 1, kind: input, shape index: {}]
  %s2 = inlined_call_operand.hbm [shape: f32[8,128], index: 2, kind: output, shape index: {}]
  %s3 = sld [smem:[#allocation0]]
  $region26: #{tpu_custom_call.1} parent=0
    _
  %s5 = ssub.s32 1, %s3
  %s6 = scalar_select 0, %s5, %s3
  $region1: #{tpu_custom_call.1} parent=0
    #allocation2 [shape = 'u8[8192]{0}', space=vmem, size = 0x2000, scoped, tag = 'input window, operand 0, single buffered']
    #allocation3 [shape = 's32[1]{0}', space=sflag, size = 0x4, scoped, tag = 'scoped memory for tpu_custom_call.1']
    #allocation4 [shape = 's32[1]{0}', space=sflag, size = 0x4, scoped, tag = 'scoped memory for tpu_custom_call.1']
    #allocation5 [shape = 'u8[8192]{0}', space=vmem, size = 0x2000, scoped, tag = 'input window, operand 1, single buffered']
    #allocation6 [shape = 's32[1]{0}', space=sflag, size = 0x4, scoped, tag = 'scoped memory for tpu_custom_call.1']
    #allocation7 [shape = 'u8[4096]{0}', space=vmem, size = 0x1000, scoped, tag = 'output window, operand 0, single buffered']
    %7 = vsyncpa [#allocation3], 0
    %8 = vsyncpa [#allocation6], 0
    %9 = vsyncpa [#allocation4], 0
    // Predicated region
    $region2: #{tpu_custom_call.1} parent=1 // pred_check
      _
    $region3: #{tpu_custom_call.1} parent=1 // pred_check_branch
      %11 = sbr.rel (0) target = $region5
    $region4: #{tpu_custom_call.1} parent=1 // pred_region
      %13 = vsyncadd [#allocation3], 0
      %s14 = sshll.u32 %s0, 4
      %s15 = int_to_ptr.hbm [resolvable:$true] %s14
      %s16 = sshll.u32 [#allocation2], 4
      %s17 = int_to_ptr.vmem [resolvable:$true] %s16
      %22 = dma.hbm_to_vmem [thread:$0]  %s15, 256, %s17, [#allocation3], 128, 128, 8
    $region5: #{tpu_custom_call.1} parent=1 // pred_fallthru
      _
    // Predicated region
    $region6: #{tpu_custom_call.1} parent=1 // pred_check
      _
    $region7: #{tpu_custom_call.1} parent=1 // pred_check_branch
      %24 = sbr.rel (0) target = $region9
    $region8: #{tpu_custom_call.1} parent=1 // pred_region
      %26 = vsyncadd [#allocation6], 0
      %s27 = sshll.u32 %s1, 4
      %s28 = int_to_ptr.hbm [resolvable:$true] %s27
      %s29 = sshll.u32 [#allocation5], 4
      %s30 = int_to_ptr.vmem [resolvable:$true] %s29
      %35 = dma.hbm_to_vmem [thread:$0]  %s28, 256, %s30, [#allocation6], 128, 128, 8
    $region9: #{tpu_custom_call.1} parent=1 // pred_fallthru
      _
    // Predicated region
    $region10: #{tpu_custom_call.1} parent=1 // pred_check
      _
    $region11: #{tpu_custom_call.1} parent=1 // pred_check_branch
      %37 = sbr.rel (0) target = $region13
    $region12: #{tpu_custom_call.1} parent=1 // pred_region
      %39 = dma.done [#allocation3], 256
    $region13: #{tpu_custom_call.1} parent=1 // pred_fallthru
      _
    // Predicated region
    $region14: #{tpu_custom_call.1} parent=1 // pred_check
      _
    $region15: #{tpu_custom_call.1} parent=1 // pred_check_branch
      %41 = sbr.rel (0) target = $region17
    $region16: #{tpu_custom_call.1} parent=1 // pred_region
      %43 = dma.done [#allocation6], 256
    $region17: #{tpu_custom_call.1} parent=1 // pred_fallthru
      _
    %v44 = vld [vmem:[#allocation5] sm:$0xff]
    %v45 = vld [vmem:[#allocation5 + $0x8] sm:$0xff]
    %v46 = vld [vmem:[#allocation2] sm:$0xff]
    %v47 = vld [vmem:[#allocation2 + $0x8] sm:$0xff]
    %v48 = vxor.u32 %v44, 2147483648
    %v49 = vxor.u32 %v45, 2147483648
    %v50 = vmul.f32 %v48, 1.442695
    %v51 = vpow.pop %v50
    %v52 = vmul.f32 %v49, 1.442695
    %v53 = vpow.pop %v52
    %v54 = vadd.f32 %v51, 1.0
    %v55 = vadd.f32 %v53, 1.0
    %v56 = vrcp.pop %v54
    %v57 = vmul.f32 %v54, %v56
    %v58 = vsub.f32 1.0, %v57
    %v59 = vmul.f32 %v56, %v58
    %v60 = vadd.f32 %v56, %v59
    %vm61 = vweird.f32 %v54
    %vm62 = vweird.f32 %v56
    %vm63 = vmor %vm61, %vm62
    %v64 = vsel %vm63, %v56, %v60
    %v65 = vand.u32 2147483647, %v54
    %vm66 = vcmp.eq.f32.partialorder %v65, 8.507059e+37
    %v67 = vand.u32 %v54, 2147483648
    %v68 = vor.u32 1.1754944e-38, %v67
    %v69 = vsel %vm66, %v68, %v64
    %v70 = vmul.f32 1.0, %v69
    %v71 = vrcp.pop %v55
    %v72 = vmul.f32 %v55, %v71
    %v73 = vsub.f32 1.0, %v72
    %v74 = vmul.f32 %v71, %v73
    %v75 = vadd.f32 %v71, %v74
    %vm76 = vweird.f32 %v55
    %vm77 = vweird.f32 %v71
    %vm78 = vmor %vm76, %vm77
    %v79 = vsel %vm78, %v71, %v75
    %v80 = vand.u32 2147483647, %v55
    %vm81 = vcmp.eq.f32.partialorder %v80, 8.507059e+37
    %v82 = vand.u32 %v55, 2147483648
    %v83 = vor.u32 1.1754944e-38, %v82
    %v84 = vsel %vm81, %v83, %v79
    %v85 = vmul.f32 1.0, %v84
    %v86 = vadd.f32 %v70, 1e-09
    %v87 = vadd.f32 %v85, 1e-09
    %v88 = vlog2.pop %v86
    %v89 = vmul.f32 %v88, 0.6931472
    %v90 = vlog2.pop %v87
    %v91 = vmul.f32 %v90, 0.6931472
    %v92 = vxor.u32 %v46, 2147483648
    %v93 = vxor.u32 %v47, 2147483648
    %v94 = vmul.f32 %v92, 1.442695
    %v95 = vpow.pop %v94
    %v96 = vmul.f32 %v93, 1.442695
    %v97 = vpow.pop %v96
    %v98 = vadd.f32 %v95, 1.0
    %v99 = vadd.f32 %v97, 1.0
    %v100 = vrcp.pop %v98
    %v101 = vmul.f32 %v98, %v100
    %v102 = vsub.f32 1.0, %v101
    %v103 = vmul.f32 %v100, %v102
    %v104 = vadd.f32 %v100, %v103
    %vm105 = vweird.f32 %v98
    %vm106 = vweird.f32 %v100
    %vm107 = vmor %vm105, %vm106
    %v108 = vsel %vm107, %v100, %v104
    %v109 = vand.u32 2147483647, %v98
    %vm110 = vcmp.eq.f32.partialorder %v109, 8.507059e+37
    %v111 = vand.u32 %v98, 2147483648
    %v112 = vor.u32 1.1754944e-38, %v111
    %v113 = vsel %vm110, %v112, %v108
    %v114 = vmul.f32 1.0, %v113
    %v115 = vrcp.pop %v99
    %v116 = vmul.f32 %v99, %v115
    %v117 = vsub.f32 1.0, %v116
    %v118 = vmul.f32 %v115, %v117
    %v119 = vadd.f32 %v115, %v118
    %vm120 = vweird.f32 %v99
    %vm121 = vweird.f32 %v115
    %vm122 = vmor %vm120, %vm121
    %v123 = vsel %vm122, %v115, %v119
    %v124 = vand.u32 2147483647, %v99
    %vm125 = vcmp.eq.f32.partialorder %v124, 8.507059e+37
    %v126 = vand.u32 %v99, 2147483648
    %v127 = vor.u32 1.1754944e-38, %v126
    %v128 = vsel %vm125, %v127, %v123
    %v129 = vmul.f32 1.0, %v128
    %v130 = vsub.f32 1.0, %v114
    %v131 = vsub.f32 1.0, %v129
    %v132 = vadd.f32 %v130, 1e-09
    %v133 = vadd.f32 %v131, 1e-09
    %v134 = vlog2.pop %v132
    %v135 = vmul.f32 %v134, 0.6931472
    %v136 = vlog2.pop %v133
    %v137 = vmul.f32 %v136, 0.6931472
    %v138 = vadd.f32 %v89, %v135
    %v139 = vadd.f32 %v91, %v137
    %v140 = vadd.f32 %v138, %v139
    %141 = vst [vmem:[#allocation7] sm:$0xff] %v140
    // Predicated region
    $region18: #{tpu_custom_call.1} parent=1 // pred_check
      _
    $region19: #{tpu_custom_call.1} parent=1 // pred_check_branch
      %143 = sbr.rel (0) target = $region21
    $region20: #{tpu_custom_call.1} parent=1 // pred_region
      %145 = vsyncadd [#allocation4], 0
      %s147 = sshll.u32 [#allocation7], 4
      %s148 = int_to_ptr.vmem [resolvable:$true] %s147
      %s149 = sshll.u32 %s2, 4
      %s150 = int_to_ptr.hbm [resolvable:$true] %s149
      %152 = dma.vmem_to_hbm [thread:$0]  %s148, 128, %s150, [#allocation4]
    $region21: #{tpu_custom_call.1} parent=1 // pred_fallthru
      _
    // Predicated region
    $region22: #{tpu_custom_call.1} parent=1 // pred_check
      _
    $region23: #{tpu_custom_call.1} parent=1 // pred_check_branch
      %154 = sbr.rel (0) target = $region25
    $region24: #{tpu_custom_call.1} parent=1 // pred_region
      %156 = dma.done [#allocation4], 128
    $region25: #{tpu_custom_call.1} parent=1 // pred_fallthru
      _
    %157 = vsyncpa [#allocation3], 1
    %158 = vsyncpa [#allocation6], 1
    %159 = vsyncpa [#allocation4], 1

</llo_original>
